<compile_context>
chip_gen: v6e
topology: v6e:2x2x1
jax: 0.10.0
libtpu: 0.0.40
codegen_flags: <defaults>
</compile_context>

<pallas_src>
import functools

import jax
import jax.numpy as jnp
from jax import lax
from jax.experimental import pallas as pl
from jax.experimental.pallas import tpu as pltpu


def _round_up(x, m):
    return (x + m - 1) // m * m


def _cdiv(a, b):
    return -(-a // b)


def _default_num_slices():
    """2-way row split feeds both v7x TensorCores; pure overhead on 1-TC chips."""
    try:
        kind = jax.devices()[0].device_kind.lower().replace(" ", "")
        if "v7" in kind or "tpu7" in kind:
            return 2
    except Exception:
        pass
    return 1


def _choose_tiling(n, d, itemsize, tile_m=None, num_slices=None,
                   target_tile_rows=512, single_tile_rows=1024):
    """Returns (tile_m, num_slices P, tiles_per_slice T, padded_rows)."""
    if num_slices is None:
        num_slices = _default_num_slices()
    num_slices = max(1, int(num_slices))
    if tile_m is None:
        if (num_slices == 1 and n <= single_tile_rows
                and 3 * n * d * itemsize <= (4 << 20)):
            # Whole map in one grid step, no padding (block == full array dims).
            return n, 1, 1, n
        # Pick the tile count first, then split rows as evenly as possible so
        # padding is at most 7 rows per tile (minimizes the wrapper-side pad).
        n_tiles = max(num_slices, _cdiv(n, target_tile_rows))
        n_tiles = _round_up(n_tiles, num_slices)
        tile_m = max(8, _round_up(_cdiv(n, n_tiles), 8))
    else:
        tile_m = max(8, _round_up(int(tile_m), 8))
    n_tiles = _round_up(_cdiv(n, tile_m), num_slices)
    tiles_per_slice = n_tiles // num_slices
    return tile_m, num_slices, tiles_per_slice, n_tiles * tile_m


def _denoiser_kernel(n_ref, raw_ref, den_ref, sha_ref,
                     w1_ref, b1_ref, w2_ref, b2_ref, w3_ref, b3_ref,
                     acc_ref, *, tiles_per_slice, padded):
    p = pl.program_id(0)   # parallel slice (maps to a TensorCore on v7x)
    t = pl.program_id(1)   # sequential row-tile index within the slice

    # Output block for slice `p` is VMEM-resident across the whole `t` loop:
    # it is used directly as a lane-dense accumulator.
    @pl.when(t == 0)
    def _init():
        acc_ref[...] = jnp.zeros_like(acc_ref)

    raw = raw_ref[...]                       # (tile_m, D), compute dtype
    tile_m = raw.shape[0]

    # ---- residual predictor MLP: Linear(D,D/4)-ReLU-Linear(D/4,D/4)-ReLU-
    # ---- Linear(D/4,D); MXU with f32 accumulation ----
    h = jnp.dot(raw, w1_ref[...], preferred_element_type=jnp.float32)
    h = jnp.maximum(h + b1_ref[...].astype(jnp.float32), 0.0)
    h = jnp.dot(h.astype(w2_ref.dtype), w2_ref[...],
                preferred_element_type=jnp.float32)
    h = jnp.maximum(h + b2_ref[...].astype(jnp.float32), 0.0)
    res = jnp.dot(h.astype(w3_ref.dtype), w3_ref[...],
                  preferred_element_type=jnp.float32)
    res = res + b3_ref[...].astype(jnp.float32)

    # ---- loss arithmetic in f32 ----
    rawf = raw.astype(jnp.float32)
    pred = den_ref[...].astype(jnp.float32) + sha_ref[...].astype(jnp.float32) + res
    # Forward-pass identity: pred - raw == pred_residual - gt_residual, so one
    # difference serves both the patch-L2 and residual-L2 losses.
    diff = pred - rawf

    # Per-row cosine scale; each norm clamped at eps separately, matching
    # torch.nn.functional.cosine_similarity. rsqrt runs on the EUP slot.
    eps = jnp.float32(1e-8)
    npred2 = jnp.sum(pred * pred, axis=-1, keepdims=True)
    nraw2 = jnp.sum(rawf * rawf, axis=-1, keepdims=True)
    inv = lax.rsqrt(jnp.maximum(npred2, eps * eps)) * lax.rsqrt(
        jnp.maximum(nraw2, eps * eps))

    # 0/1 band-reduction matrix: S @ x collapses (tile_m, D) -> (8, D) on the
    # MXU (which has large slack here) instead of long VPU add chains.  The
    # row-validity mask for zero-padded rows is folded into S, so no extra
    # full-tile mask multiplies are needed.
    col = lax.broadcasted_iota(jnp.int32, (8, tile_m), 1)
    band = lax.broadcasted_iota(jnp.int32, (8, tile_m), 0)
    sel = (col % 8) == band
    if padded:
        row0 = (p * tiles_per_slice + t) * tile_m
        sel = jnp.logical_and(sel, (row0 + col) < n_ref[0])
    s_mat = sel.astype(jnp.float32)

    # Lane-dense partial sums; the tiny final reduction happens once in plain
    # JAX on the kernel output.
    acc_ref[0:8, :] += jnp.dot(s_mat, diff * diff,
                               preferred_element_type=jnp.float32)
    acc_ref[8:16, :] += jnp.dot(s_mat, jnp.abs(res),
                                preferred_element_type=jnp.float32)
    acc_ref[16:24, :] += jnp.dot(s_mat, (pred * rawf) * inv,
                                 preferred_element_type=jnp.float32)


def prepare_shared_artifacts(shared_artifacts_nchw):
    """permute(0,2,3,1).reshape(-1, feat_dim) — call ONCE and cache the result."""
    _, d, h, w = shared_artifacts_nchw.shape
    return jnp.transpose(shared_artifacts_nchw, (0, 2, 3, 1)).reshape(h * w, d)


def single_image_denoiser_forward(
    raw_vit_outputs,      # (H, W, D) or (N, D) raw ViT features
    denoised_feats,       # (N, D)    output of the (external) neural field
    shared_patterns,      # (N, D)    pre-permuted shared_artifacts (see helper)
    mlp_params,           # dict: w1 (D,D4), b1 (D4,), w2 (D4,D4), b2, w3 (D4,D), b3
    *, compute_dtype=jnp.bfloat16, tile_m=None, num_slices=None,
    target_tile_rows=512,
):
    D = raw_vit_outputs.shape[-1]
    raw = raw_vit_outputs.reshape(-1, D)
    N = raw.shape[0]
    den = denoised_feats.reshape(N, D)
    sha = shared_patterns.reshape(N, D)
    D4 = mlp_params["w1"].shape[-1]

    cd = jnp.dtype(compute_dtype)
    itemsize = cd.itemsize
    tm, P, T, n_pad = _choose_tiling(N, D, itemsize, tile_m, num_slices,
                                     target_tile_rows)
    padded = n_pad != N

    def _prep(x):
        # Cast + (optional) pad fuse into a single XLA copy; when the caller
        # already passes compute_dtype and no padding is needed, this is a no-op.
        x = x.astype(cd)
        if padded:
            x = jnp.pad(x, ((0, n_pad - N), (0, 0)))
        return x

    raw, den, sha = _prep(raw), _prep(den), _prep(sha)

    w1 = mlp_params["w1"].astype(cd)
    w2 = mlp_params["w2"].astype(cd)
    w3 = mlp_params["w3"].astype(cd)
    b1 = mlp_params["b1"].reshape(1, D4).astype(jnp.float32)
    b2 = mlp_params["b2"].reshape(1, D4).astype(jnp.float32)
    b3 = mlp_params["b3"].reshape(1, D).astype(jnp.float32)

    row_spec = pl.BlockSpec((tm, D), lambda p, t, n: (p * T + t, 0))
    full = lambda shape: pl.BlockSpec(shape, lambda p, t, n: (0, 0))

    kernel = functools.partial(_denoiser_kernel, tiles_per_slice=T, padded=padded)

    # Explicit VMEM budget computed from the block footprint (double-buffered
    # inputs + weights + resident accumulator + f32 temporaries headroom),
    # capped at 64 MiB so it is valid on v7x as well as v5e/v6e.
    w_elems = D * D4 + D4 * D4 + D4 * D + 2 * D4 + D
    vmem_bytes = (3 * 2 * tm * D * itemsize + 2 * w_elems * itemsize
                  + 2 * P * 24 * D * 4 + 10 * tm * D * 4 + (8 << 20))
    vmem_limit = int(min(max(vmem_bytes, 32 << 20), 64 << 20))

    cost = pl.CostEstimate(
        flops=int(2 * N * (D * D4 + D4 * D4 + D4 * D) + 14 * N * D),
        transcendentals=int(2 * N),
        bytes_accessed=int(3 * N * D * itemsize + w_elems * itemsize
                           + P * 24 * D * 4),
    )

    acc = pl.pallas_call(
        kernel,
        out_shape=jax.ShapeDtypeStruct((P * 24, D), jnp.float32),
        grid_spec=pltpu.PrefetchScalarGridSpec(
            num_scalar_prefetch=1,          # n_valid lands in SMEM
            grid=(P, T),
            in_specs=[
                row_spec, row_spec, row_spec,
                full((D, D4)), full((1, D4)),
                full((D4, D4)), full((1, D4)),
                full((D4, D)), full((1, D)),
            ],
            out_specs=pl.BlockSpec((24, D), lambda p, t, n: (p, 0)),
        ),
        compiler_params=pltpu.CompilerParams(
            dimension_semantics=("parallel", "arbitrary"),
            vmem_limit_bytes=vmem_limit,
        ),
        cost_estimate=cost,
    )(jnp.array([N], jnp.int32), raw, den, sha, w1, b1, w2, b2, w3, b3)

    # Tiny final reductions + scalar loss glue in plain JAX.
    acc = acc.reshape(P, 3, 8, D)
    sum_sq = jnp.sum(acc[:, 0])
    sum_abs = jnp.sum(acc[:, 1])
    sum_cos = jnp.sum(acc[:, 2])

    n_elems = jnp.float32(N * D)
    n_rows = jnp.float32(N)
    patch_l2_loss = sum_sq / n_elems
    cosine_similarity_loss = 1.0 - sum_cos / n_rows
    # Forward values only: mse(pred_residual, gt_residual) == mse(pred, raw).
    residual_loss = 0.1 * patch_l2_loss
    residual_sparsity_loss = 0.02 * (sum_abs / n_elems)
    loss = (patch_l2_loss + cosine_similarity_loss
            + residual_loss + residual_sparsity_loss)

    return {
        "patch_l2_loss": patch_l2_loss,
        "cosine_similarity_loss": cosine_similarity_loss,
        "loss": loss,
        "residual_loss": residual_loss,
        "residual_sparsity_loss": residual_sparsity_loss,
    }


if __name__ == "__main__":
    # Small shapes consistent with the module: noise map 8x8, feat_dim=128.
    H, W, D = 8, 8, 128
    D4 = D // 4
    N = H * W

    key = jax.random.PRNGKey(0)
    (k_raw, k_art, k_w1, k_w2, k_w3, k_nf1, k_nf2) = jax.random.split(key, 7)

    raw_vit_outputs = jax.random.normal(k_raw, (H, W, D), dtype=jnp.float32)

    # Normalized patch-center pixel coordinates in [0, 1], shape (N, 2).
    ys = (jnp.arange(H, dtype=jnp.float32) + 0.5) / H
    xs = (jnp.arange(W, dtype=jnp.float32) + 0.5) / W
    gy, gx = jnp.meshgrid(ys, xs, indexing="ij")
    global_pixel_coords = jnp.stack([gx, gy], axis=-1).reshape(N, 2)

    # Module parameters (deterministic init).
    shared_artifacts = 0.02 * jax.random.normal(k_art, (1, D, H, W), dtype=jnp.float32)
    mlp_params = {
        "w1": 0.05 * jax.random.normal(k_w1, (D, D4), dtype=jnp.float32),
        "b1": jnp.zeros((D4,), dtype=jnp.float32),
        "w2": 0.05 * jax.random.normal(k_w2, (D4, D4), dtype=jnp.float32),
        "b2": jnp.zeros((D4,), dtype=jnp.float32),
        "w3": 0.05 * jax.random.normal(k_w3, (D4, D), dtype=jnp.float32),
        "b3": jnp.zeros((D,), dtype=jnp.float32),
    }

    # Deterministic stand-in for the external neural_field(global_pixel_coords).
    nf_w1 = 0.5 * jax.random.normal(k_nf1, (2, 64), dtype=jnp.float32)
    nf_w2 = 0.1 * jax.random.normal(k_nf2, (64, D), dtype=jnp.float32)
    denoised_feats = jnp.maximum(global_pixel_coords @ nf_w1, 0.0) @ nf_w2

    # Pre-permute the NCHW parameter once (cached outside the per-call path).
    shared_patterns = prepare_shared_artifacts(shared_artifacts)

    # 1) Default config: bf16 streams, whole map in ONE unpadded grid step.
    results_bf16 = single_image_denoiser_forward(
        raw_vit_outputs, denoised_feats, shared_patterns, mlp_params)
    jax.block_until_ready(results_bf16["loss"])

    # 2) f32 compute, forced small-tile / 2-slice / padded configuration to
    #    exercise the multi-tile, masking and per-slice accumulation paths.
    results_f32 = single_image_denoiser_forward(
        raw_vit_outputs, denoised_feats, shared_patterns, mlp_params,
        compute_dtype=jnp.float32, tile_m=24, num_slices=2)
    jax.block_until_ready(results_f32["loss"])

    # Pure-JAX f32 reference of the forward semantics.
    raw2 = raw_vit_outputs.reshape(N, D)
    h = jnp.maximum(raw2 @ mlp_params["w1"] + mlp_params["b1"], 0.0)
    h = jnp.maximum(h @ mlp_params["w2"] + mlp_params["b2"], 0.0)
    res = h @ mlp_params["w3"] + mlp_params["b3"]
    pred = denoised_feats + shared_patterns + res
    ref_l2 = jnp.mean((pred - raw2) ** 2)
    eps = 1e-8
    npred = jnp.maximum(jnp.linalg.norm(pred, axis=-1), eps)
    nraw = jnp.maximum(jnp.linalg.norm(raw2, axis=-1), eps)
    cos = jnp.sum(pred * raw2, -1) / (npred * nraw)
    ref_cos = 1.0 - jnp.mean(cos)
    ref_resl = 0.1 * jnp.mean((res - (raw2 - denoised_feats - shared_patterns)) ** 2)
    ref_sp = 0.02 * jnp.mean(jnp.abs(res))
    ref_loss = ref_l2 + ref_cos + ref_resl + ref_sp
    ref = {
        "patch_l2_loss": ref_l2,
        "cosine_similarity_loss": ref_cos,
        "residual_loss": ref_resl,
        "residual_sparsity_loss": ref_sp,
        "loss": ref_loss,
    }

    def _check(got, rtol, atol):
        for name, val in ref.items():
            assert jnp.allclose(got[name], val, rtol=rtol, atol=atol), (
                name, got[name], val)

    _check(results_f32, rtol=3e-5, atol=3e-5)     # exact-math path
    _check(results_bf16, rtol=3e-2, atol=3e-2)    # bf16 input quantization

    print("KERNEL_OK")
</pallas_src>

<mosaic_0001>
module attributes {stable_mosaic.version = 11 : i64} {
  func.func @_denoiser_kernel(%arg0: i32, %arg1: i32, %arg2: memref<1xi32, #tpu.memory_space<smem>>, %arg3: memref<64x128xbf16, #tpu.memory_space<vmem>>, %arg4: memref<64x128xbf16, #tpu.memory_space<vmem>>, %arg5: memref<64x128xbf16, #tpu.memory_space<vmem>>, %arg6: memref<128x32xbf16, #tpu.memory_space<vmem>>, %arg7: memref<1x32xf32, #tpu.memory_space<vmem>>, %arg8: memref<32x32xbf16, #tpu.memory_space<vmem>>, %arg9: memref<1x32xf32, #tpu.memory_space<vmem>>, %arg10: memref<32x128xbf16, #tpu.memory_space<vmem>>, %arg11: memref<1x128xf32, #tpu.memory_space<vmem>>, %arg12: memref<24x128xf32, #tpu.memory_space<vmem>>) attributes {dimension_semantics = [#tpu.dimension_semantics<parallel>, #tpu.dimension_semantics<arbitrary>], iteration_bounds = array<i64: 1, 1>, scalar_prefetch = 1 : i64, scratch_operands = 0 : i64, tpu.core_type = #tpu.core_type<tc>, window_params = [{transform_indices = @transform_0, window_bounds = array<i64: 64, 128>}, {transform_indices = @transform_1, window_bounds = array<i64: 64, 128>}, {transform_indices = @transform_2, window_bounds = array<i64: 64, 128>}, {pipeline_mode = #tpu.pipeline_mode<synchronous>, transform_indices = @transform_3, window_bounds = array<i64: 128, 32>}, {pipeline_mode = #tpu.pipeline_mode<synchronous>, transform_indices = @transform_4, window_bounds = array<i64: 1, 32>}, {pipeline_mode = #tpu.pipeline_mode<synchronous>, transform_indices = @transform_5, window_bounds = array<i64: 32, 32>}, {pipeline_mode = #tpu.pipeline_mode<synchronous>, transform_indices = @transform_6, window_bounds = array<i64: 1, 32>}, {pipeline_mode = #tpu.pipeline_mode<synchronous>, transform_indices = @transform_7, window_bounds = array<i64: 32, 128>}, {pipeline_mode = #tpu.pipeline_mode<synchronous>, transform_indices = @transform_8, window_bounds = array<i64: 1, 128>}, {transform_indices = @transform_9, window_bounds = array<i64: 24, 128>}]} {
    %c0_i32 = arith.constant 0 : i32
    %0 = arith.cmpi eq, %arg1, %c0_i32 : i32
    %1 = arith.extui %0 : i1 to i32
    %c0_i32_0 = arith.constant 0 : i32
    %2 = arith.cmpi ne, %1, %c0_i32_0 : i32
    scf.if %2 {
      %cst_45 = arith.constant 0.000000e+00 : f32
      %86 = vector.broadcast %cst_45 : f32 to vector<24x128xf32>
      %c0_46 = arith.constant 0 : index
      %c0_47 = arith.constant 0 : index
      %87 = vector.load %arg12[%c0_46, %c0_47] : memref<24x128xf32, #tpu.memory_space<vmem>>, vector<24x128xf32>
      tpu.vector_store %arg12[%c0_46, %c0_47], %86 {strides = array<i32>} : memref<24x128xf32, #tpu.memory_space<vmem>>, vector<24x128xf32>,
    } else {
    }
    %c0 = arith.constant 0 : index
    %c0_1 = arith.constant 0 : index
    %3 = vector.load %arg3[%c0, %c0_1] : memref<64x128xbf16, #tpu.memory_space<vmem>>, vector<64x128xbf16>
    %c0_2 = arith.constant 0 : index
    %c0_3 = arith.constant 0 : index
    %4 = vector.load %arg6[%c0_2, %c0_3] : memref<128x32xbf16, #tpu.memory_space<vmem>>, vector<128x32xbf16>
    %cst = arith.constant dense<0.000000e+00> : vector<64x32xf32>
    %5 = tpu.matmul %3, %4, %cst {dimension_numbers = #tpu.dot_dimension_numbers<[1], [0], [0], [1], [0, 0, 1, 1], [], []>} : vector<64x128xbf16>, vector<128x32xbf16>, vector<64x32xf32> -> vector<64x32xf32>
    %c0_4 = arith.constant 0 : index
    %c0_5 = arith.constant 0 : index
    %6 = vector.load %arg7[%c0_4, %c0_5] : memref<1x32xf32, #tpu.memory_space<vmem>>, vector<1x32xf32>
    %7 = vector.broadcast %6 : vector<1x32xf32> to vector<64x32xf32>
    %8 = arith.addf %5, %7 : vector<64x32xf32>
    %cst_6 = arith.constant 0.000000e+00 : f32
    %9 = vector.broadcast %cst_6 : f32 to vector<64x32xf32>
    %10 = arith.maximumf %8, %9 : vector<64x32xf32>
    %11 = arith.truncf %10 : vector<64x32xf32> to vector<64x32xbf16>
    %c0_7 = arith.constant 0 : index
    %c0_8 = arith.constant 0 : index
    %12 = vector.load %arg8[%c0_7, %c0_8] : memref<32x32xbf16, #tpu.memory_space<vmem>>, vector<32x32xbf16>
    %cst_9 = arith.constant dense<0.000000e+00> : vector<64x32xf32>
    %13 = tpu.matmul %11, %12, %cst_9 {dimension_numbers = #tpu.dot_dimension_numbers<[1], [0], [0], [1], [0, 0, 1, 1], [], []>} : vector<64x32xbf16>, vector<32x32xbf16>, vector<64x32xf32> -> vector<64x32xf32>
    %c0_10 = arith.constant 0 : index
    %c0_11 = arith.constant 0 : index
    %14 = vector.load %arg9[%c0_10, %c0_11] : memref<1x32xf32, #tpu.memory_space<vmem>>, vector<1x32xf32>
    %15 = vector.broadcast %14 : vector<1x32xf32> to vector<64x32xf32>
    %16 = arith.addf %13, %15 : vector<64x32xf32>
    %cst_12 = arith.constant 0.000000e+00 : f32
    %17 = vector.broadcast %cst_12 : f32 to vector<64x32xf32>
    %18 = arith.maximumf %16, %17 : vector<64x32xf32>
    %19 = arith.truncf %18 : vector<64x32xf32> to vector<64x32xbf16>
    %c0_13 = arith.constant 0 : index
    %c0_14 = arith.constant 0 : index
    %20 = vector.load %arg10[%c0_13, %c0_14] : memref<32x128xbf16, #tpu.memory_space<vmem>>, vector<32x128xbf16>
    %cst_15 = arith.constant dense<0.000000e+00> : vector<64x128xf32>
    %21 = tpu.matmul %19, %20, %cst_15 {dimension_numbers = #tpu.dot_dimension_numbers<[1], [0], [0], [1], [0, 0, 1, 1], [], []>} : vector<64x32xbf16>, vector<32x128xbf16>, vector<64x128xf32> -> vector<64x128xf32>
    %c0_16 = arith.constant 0 : index
    %c0_17 = arith.constant 0 : index
    %22 = vector.load %arg11[%c0_16, %c0_17] : memref<1x128xf32, #tpu.memory_space<vmem>>, vector<1x128xf32>
    %23 = vector.broadcast %22 : vector<1x128xf32> to vector<64x128xf32>
    %24 = arith.addf %21, %23 : vector<64x128xf32>
    %25 = arith.extf %3 : vector<64x128xbf16> to vector<64x128xf32>
    %c0_18 = arith.constant 0 : index
    %c0_19 = arith.constant 0 : index
    %26 = vector.load %arg4[%c0_18, %c0_19] : memref<64x128xbf16, #tpu.memory_space<vmem>>, vector<64x128xbf16>
    %27 = arith.extf %26 : vector<64x128xbf16> to vector<64x128xf32>
    %c0_20 = arith.constant 0 : index
    %c0_21 = arith.constant 0 : index
    %28 = vector.load %arg5[%c0_20, %c0_21] : memref<64x128xbf16, #tpu.memory_space<vmem>>, vector<64x128xbf16>
    %29 = arith.extf %28 : vector<64x128xbf16> to vector<64x128xf32>
    %30 = arith.addf %27, %29 : vector<64x128xf32>
    %31 = arith.addf %30, %24 : vector<64x128xf32>
    %32 = arith.subf %31, %25 : vector<64x128xf32>
    %33 = arith.mulf %31, %31 : vector<64x128xf32>
    %cst_22 = arith.constant dense<0.000000e+00> : vector<64xf32>
    %34 = vector.multi_reduction <add>, %33, %cst_22 [1] : vector<64x128xf32> to vector<64xf32>
    %35 = vector.shape_cast %34 : vector<64xf32> to vector<64x1xf32>
    %36 = arith.mulf %25, %25 : vector<64x128xf32>
    %cst_23 = arith.constant dense<0.000000e+00> : vector<64xf32>
    %37 = vector.multi_reduction <add>, %36, %cst_23 [1] : vector<64x128xf32> to vector<64xf32>
    %38 = vector.shape_cast %37 : vector<64xf32> to vector<64x1xf32>
    %cst_24 = arith.constant 9.99999993E-9 : f32
    %cst_25 = arith.constant 9.99999993E-9 : f32
    %39 = arith.mulf %cst_24, %cst_25 : f32
    %40 = vector.broadcast %39 : f32 to vector<64x1xf32>
    %41 = arith.maximumf %35, %40 : vector<64x1xf32>
    %42 = math.rsqrt %41 : vector<64x1xf32>
    %cst_26 = arith.constant 9.99999993E-9 : f32
    %cst_27 = arith.constant 9.99999993E-9 : f32
    %43 = arith.mulf %cst_26, %cst_27 : f32
    %44 = vector.broadcast %43 : f32 to vector<64x1xf32>
    %45 = arith.maximumf %38, %44 : vector<64x1xf32>
    %46 = math.rsqrt %45 : vector<64x1xf32>
    %47 = arith.mulf %42, %46 : vector<64x1xf32>
    %48 = tpu.iota {dimensions = array<i32: 1>} : vector<8x64xi32>
    %49 = tpu.iota {dimensions = array<i32: 0>} : vector<8x64xi32>
    %c8_i32 = arith.constant 8 : i32
    %c0_i32_28 = arith.constant 0 : i32
    %50 = arith.cmpi eq, %c8_i32, %c0_i32_28 : i32
    %c1_i32 = arith.constant 1 : i32
    %51 = arith.select %50, %c1_i32, %c8_i32 : i32
    %52 = vector.broadcast %51 : i32 to vector<8x64xi32>
    %53 = arith.remsi %48, %52 : vector<8x64xi32>
    %c0_i32_29 = arith.constant 0 : i32
    %54 = vector.broadcast %c0_i32_29 : i32 to vector<8x64xi32>
    %55 = arith.cmpi ne, %53, %54 : vector<8x64xi32>
    %c0_i32_30 = arith.constant 0 : i32
    %56 = vector.broadcast %c0_i32_30 : i32 to vector<8x64xi32>
    %57 = arith.cmpi slt, %53, %56 : vector<8x64xi32>
    %c0_i32_31 = arith.constant 0 : i32
    %58 = arith.cmpi slt, %51, %c0_i32_31 : i32
    %59 = vector.broadcast %58 : i1 to vector<8x64xi1>
    %60 = vector.broadcast %59 : vector<8x64xi1> to vector<8x64xi1>
    %61 = arith.xori %57, %60 : vector<8x64xi1>
    %62 = arith.andi %61, %55 : vector<8x64xi1>
    %63 = vector.broadcast %51 : i32 to vector<8x64xi32>
    %64 = arith.addi %53, %63 : vector<8x64xi32>
    %65 = arith.select %62, %64, %53 : vector<8x64xi1>, vector<8x64xi32>
    %66 = arith.cmpi eq, %65, %49 : vector<8x64xi32>
    %67 = arith.extui %66 : vector<8x64xi1> to vector<8x64xi32>
    %68 = arith.sitofp %67 : vector<8x64xi32> to vector<8x64xf32>
    %c0_32 = arith.constant 0 : index
    %c0_33 = arith.constant 0 : index
    %69 = vector.load %arg12[%c0_32, %c0_33] : memref<24x128xf32, #tpu.memory_space<vmem>>, vector<8x128xf32>
    %70 = arith.mulf %32, %32 : vector<64x128xf32>
    %cst_34 = arith.constant dense<0.000000e+00> : vector<8x128xf32>
    %71 = tpu.matmul %68, %70, %cst_34 {dimension_numbers = #tpu.dot_dimension_numbers<[1], [0], [0], [1], [0, 0, 1, 1], [], []>} : vector<8x64xf32>, vector<64x128xf32>, vector<8x128xf32> -> vector<8x128xf32>
    %72 = arith.addf %69, %71 : vector<8x128xf32>
    %c0_35 = arith.constant 0 : index
    %c0_36 = arith.constant 0 : index
    %73 = vector.load %arg12[%c0_35, %c0_36] : memref<24x128xf32, #tpu.memory_space<vmem>>, vector<8x128xf32>
    tpu.vector_store %arg12[%c0_35, %c0_36], %72 {strides = array<i32>} : memref<24x128xf32, #tpu.memory_space<vmem>>, vector<8x128xf32>,
    %c8 = arith.constant 8 : index
    %c0_37 = arith.constant 0 : index
    %74 = vector.load %arg12[%c8, %c0_37] : memref<24x128xf32, #tpu.memory_space<vmem>>, vector<8x128xf32>
    %75 = math.absf %24 : vector<64x128xf32>
    %cst_38 = arith.constant dense<0.000000e+00> : vector<8x128xf32>
    %76 = tpu.matmul %68, %75, %cst_38 {dimension_numbers = #tpu.dot_dimension_numbers<[1], [0], [0], [1], [0, 0, 1, 1], [], []>} : vector<8x64xf32>, vector<64x128xf32>, vector<8x128xf32> -> vector<8x128xf32>
    %77 = arith.addf %74, %76 : vector<8x128xf32>
    %c8_39 = arith.constant 8 : index
    %c0_40 = arith.constant 0 : index
    %78 = vector.load %arg12[%c8_39, %c0_40] : memref<24x128xf32, #tpu.memory_space<vmem>>, vector<8x128xf32>
    tpu.vector_store %arg12[%c8_39, %c0_40], %77 {strides = array<i32>} : memref<24x128xf32, #tpu.memory_space<vmem>>, vector<8x128xf32>,
    %c16 = arith.constant 16 : index
    %c0_41 = arith.constant 0 : index
    %79 = vector.load %arg12[%c16, %c0_41] : memref<24x128xf32, #tpu.memory_space<vmem>>, vector<8x128xf32>
    %80 = arith.mulf %31, %25 : vector<64x128xf32>
    %81 = vector.broadcast %47 : vector<64x1xf32> to vector<64x128xf32>
    %82 = arith.mulf %80, %81 : vector<64x128xf32>
    %cst_42 = arith.constant dense<0.000000e+00> : vector<8x128xf32>
    %83 = tpu.matmul %68, %82, %cst_42 {dimension_numbers = #tpu.dot_dimension_numbers<[1], [0], [0], [1], [0, 0, 1, 1], [], []>} : vector<8x64xf32>, vector<64x128xf32>, vector<8x128xf32> -> vector<8x128xf32>
    %84 = arith.addf %79, %83 : vector<8x128xf32>
    %c16_43 = arith.constant 16 : index
    %c0_44 = arith.constant 0 : index
    %85 = vector.load %arg12[%c16_43, %c0_44] : memref<24x128xf32, #tpu.memory_space<vmem>>, vector<8x128xf32>
    tpu.vector_store %arg12[%c16_43, %c0_44], %84 {strides = array<i32>} : memref<24x128xf32, #tpu.memory_space<vmem>>, vector<8x128xf32>,
    return
  }
  func.func @transform_0(%arg0: i32, %arg1: i32, %arg2: memref<1xi32, #tpu.memory_space<smem>>) -> (i32, i32) {
    %c1_i32 = arith.constant 1 : i32
    %0 = arith.muli %arg0, %c1_i32 : i32
    %1 = arith.addi %0, %arg1 : i32
    %c0_i32 = arith.constant 0 : i32
    %c0_i32_0 = arith.constant 0 : i32
    return %1, %c0_i32 : i32, i32
  }
  func.func @transform_1(%arg0: i32, %arg1: i32, %arg2: memref<1xi32, #tpu.memory_space<smem>>) -> (i32, i32) {
    %c1_i32 = arith.constant 1 : i32
    %0 = arith.muli %arg0, %c1_i32 : i32
    %1 = arith.addi %0, %arg1 : i32
    %c0_i32 = arith.constant 0 : i32
    %c0_i32_0 = arith.constant 0 : i32
    return %1, %c0_i32 : i32, i32
  }
  func.func @transform_2(%arg0: i32, %arg1: i32, %arg2: memref<1xi32, #tpu.memory_space<smem>>) -> (i32, i32) {
    %c1_i32 = arith.constant 1 : i32
    %0 = arith.muli %arg0, %c1_i32 : i32
    %1 = arith.addi %0, %arg1 : i32
    %c0_i32 = arith.constant 0 : i32
    %c0_i32_0 = arith.constant 0 : i32
    return %1, %c0_i32 : i32, i32
  }
  func.func @transform_3(%arg0: i32, %arg1: i32, %arg2: memref<1xi32, #tpu.memory_space<smem>>) -> (i32, i32) {
    %c0_i32 = arith.constant 0 : i32
    %c0_i32_0 = arith.constant 0 : i32
    %c0_i32_1 = arith.constant 0 : i32
    return %c0_i32, %c0_i32_0 : i32, i32
  }
  func.func @transform_4(%arg0: i32, %arg1: i32, %arg2: memref<1xi32, #tpu.memory_space<smem>>) -> (i32, i32) {
    %c0_i32 = arith.constant 0 : i32
    %c0_i32_0 = arith.constant 0 : i32
    %c0_i32_1 = arith.constant 0 : i32
    return %c0_i32, %c0_i32_0 : i32, i32
  }
  func.func @transform_5(%arg0: i32, %arg1: i32, %arg2: memref<1xi32, #tpu.memory_space<smem>>) -> (i32, i32) {
    %c0_i32 = arith.constant 0 : i32
    %c0_i32_0 = arith.constant 0 : i32
    %c0_i32_1 = arith.constant 0 : i32
    return %c0_i32, %c0_i32_0 : i32, i32
  }
  func.func @transform_6(%arg0: i32, %arg1: i32, %arg2: memref<1xi32, #tpu.memory_space<smem>>) -> (i32, i32) {
    %c0_i32 = arith.constant 0 : i32
    %c0_i32_0 = arith.constant 0 : i32
    %c0_i32_1 = arith.constant 0 : i32
    return %c0_i32, %c0_i32_0 : i32, i32
  }
  func.func @transform_7(%arg0: i32, %arg1: i32, %arg2: memref<1xi32, #tpu.memory_space<smem>>) -> (i32, i32) {
    %c0_i32 = arith.constant 0 : i32
    %c0_i32_0 = arith.constant 0 : i32
    %c0_i32_1 = arith.constant 0 : i32
    return %c0_i32, %c0_i32_0 : i32, i32
  }
  func.func @transform_8(%arg0: i32, %arg1: i32, %arg2: memref<1xi32, #tpu.memory_space<smem>>) -> (i32, i32) {
    %c0_i32 = arith.constant 0 : i32
    %c0_i32_0 = arith.constant 0 : i32
    %c0_i32_1 = arith.constant 0 : i32
    return %c0_i32, %c0_i32_0 : i32, i32
  }
  func.func @transform_9(%arg0: i32, %arg1: i32, %arg2: memref<1xi32, #tpu.memory_space<smem>>) -> (i32, i32) {
    %c0_i32 = arith.constant 0 : i32
    %c0_i32_0 = arith.constant 0 : i32
    return %arg0, %c0_i32 : i32, i32
  }
}

</mosaic_0001>

<llo_original>
// kernel: tpu_custom_call.1
$region0: #{tpu_custom_call.1}
  #allocation0 [shape = 'u32[]', space=smem, size = 0x4, offset = 0x4, fixed_abs, tag = 'smem constant byte address 0x4 - core index']
  #allocation1 [shape = 'u32[144,128]{1,0:T(1,128)}', space=vmem, size = 0x12000, scoped, tag = 'internal scratch']
  #allocation2 [shape = 's32[1]{0}', space=sflag, size = 0x4, scoped, tag = 'scoped memory for tpu_custom_call.1']
  #allocation3 [shape = 's32[1]{0:T(128)S(6)}', space=smem, size = 0x200, scoped, tag = 'prefetched SMEM operand 0']
  %s0 = inlined_call_operand.<no memory space> [shape: s32[1], index: 0, kind: input, shape index: {}]
  %s1 = inlined_call_operand.vmem [shape: bf16[64,128], index: 1, kind: input, shape index: {}]
  %s2 = inlined_call_operand.vmem [shape: bf16[64,128], index: 2, kind: input, shape index: {}]
  %s3 = inlined_call_operand.hbm [shape: bf16[64,128], index: 3, kind: input, shape index: {}]
  %s4 = inlined_call_operand.vmem [shape: bf16[128,32], index: 4, kind: input, shape index: {}]
  %s5 = inlined_call_operand.vmem [shape: f32[1,32], index: 5, kind: input, shape index: {}]
  %s6 = inlined_call_operand.vmem [shape: bf16[32,32], index: 6, kind: input, shape index: {}]
  %s7 = inlined_call_operand.vmem [shape: f32[1,32], index: 7, kind: input, shape index: {}]
  %s8 = inlined_call_operand.hbm [shape: bf16[32,128], index: 8, kind: input, shape index: {}]
  %s9 = inlined_call_operand.vmem [shape: f32[1,128], index: 9, kind: input, shape index: {}]
  %s10 = inlined_call_operand.hbm [shape: f32[24,128], index: 10, kind: output, shape index: {}]
  %s11 = sld [smem:[#allocation0]]
  $region58: #{tpu_custom_call.1} parent=0
    _
  %s13 = ssub.s32 1, %s11
  %s14 = scalar_select 0, %s13, %s11
  %15 = sst [smem:[#allocation3]] %s0
  $region1: #{tpu_custom_call.1} parent=0
    #allocation4 [shape = 'u8[16384]{0}', space=vmem, size = 0x4000, scoped, tag = 'input window, operand 3, single buffered']
    #allocation5 [shape = 's32[1]{0}', space=sflag, size = 0x4, scoped, tag = 'scoped memory for tpu_custom_call.1']
    #allocation6 [shape = 's32[1]{0}', space=sflag, size = 0x4, scoped, tag = 'scoped memory for tpu_custom_call.1']
    #allocation7 [shape = 'u8[8192]{0}', space=vmem, size = 0x2000, scoped, tag = 'input window, operand 8, single buffered']
    #allocation8 [shape = 's32[1]{0}', space=sflag, size = 0x4, scoped, tag = 'scoped memory for tpu_custom_call.1']
    #allocation9 [shape = 'u8[12288]{0}', space=vmem, size = 0x3000, scoped, tag = 'output window, operand 0, single buffered']
    %16 = vsyncpa [#allocation5], 0
    %17 = vsyncpa [#allocation8], 0
    %18 = vsyncpa [#allocation6], 0
    // Predicated region
    $region2: #{tpu_custom_call.1} parent=1 // pred_check
      _
    $region3: #{tpu_custom_call.1} parent=1 // pred_check_branch
      %20 = sbr.rel (0) target = $region5
    $region4: #{tpu_custom_call.1} parent=1 // pred_region
      %s21 = sadd.s32 0, 0
      %s22 = smul.u32 8, %s21
      %p23 = scmp.lt.s32.totalorder %s22, 7
      %s24 = scalar_select %p23, %s22, 7
      %s25 = smul.addr %s24, 4
      %s26 = scalar_lea.vmem %s1, %s25
      %s27 = sadd.s32 0, 0
      %s28 = smul.u32 8, %s27
    $region5: #{tpu_custom_call.1} parent=1 // pred_fallthru
      _
    // Predicated region
    $region6: #{tpu_custom_call.1} parent=1 // pred_check
      _
    $region7: #{tpu_custom_call.1} parent=1 // pred_check_branch
      %30 = sbr.rel (0) target = $region9
    $region8: #{tpu_custom_call.1} parent=1 // pred_region
      %s31 = sadd.s32 0, 0
      %s32 = smul.u32 8, %s31
      %p33 = scmp.lt.s32.totalorder %s32, 7
      %s34 = scalar_select %p33, %s32, 7
      %s35 = smul.addr %s34, 4
      %s36 = scalar_lea.vmem %s2, %s35
      %s37 = sadd.s32 0, 0
      %s38 = smul.u32 8, %s37
    $region9: #{tpu_custom_call.1} parent=1 // pred_fallthru
      _
    // Predicated region
    $region10: #{tpu_custom_call.1} parent=1 // pred_check
      _
    $region11: #{tpu_custom_call.1} parent=1 // pred_check_branch
      %40 = sbr.rel (0) target = $region13
    $region12: #{tpu_custom_call.1} parent=1 // pred_region
      %s41 = sadd.s32 0, 0
      %s42 = smul.u32 8, %s41
      %s44 = ssub.s32 512, 512
      %45 = vsyncadd [#allocation5], %s44
      %s46 = smul.addr %s42, 64
      %s47 = scalar_lea.hbm %s3, %s46
      %s48 = sshll.u32 [#allocation4], 4
      %s49 = int_to_ptr.vmem [resolvable:$true] %s48
      %54 = dma.hbm_to_vmem [thread:$0]  %s47, 512, %s49, [#allocation5], 64, 64, 4
    $region13: #{tpu_custom_call.1} parent=1 // pred_fallthru
      _
    // Predicated region
    $region14: #{tpu_custom_call.1} parent=1 // pred_check
      _
    $region15: #{tpu_custom_call.1} parent=1 // pred_check_branch
      %56 = sbr.rel (0) target = $region17
    $region16: #{tpu_custom_call.1} parent=1 // pred_region
      _
    $region17: #{tpu_custom_call.1} parent=1 // pred_fallthru
      _
    // Predicated region
    $region18: #{tpu_custom_call.1} parent=1 // pred_check
      _
    $region19: #{tpu_custom_call.1} parent=1 // pred_check_branch
      %58 = sbr.rel (0) target = $region21
    $region20: #{tpu_custom_call.1} parent=1 // pred_region
      _
    $region21: #{tpu_custom_call.1} parent=1 // pred_fallthru
      _
    // Predicated region
    $region22: #{tpu_custom_call.1} parent=1 // pred_check
      _
    $region23: #{tpu_custom_call.1} parent=1 // pred_check_branch
      %60 = sbr.rel (0) target = $region25
    $region24: #{tpu_custom_call.1} parent=1 // pred_region
      _
    $region25: #{tpu_custom_call.1} parent=1 // pred_fallthru
      _
    // Predicated region
    $region26: #{tpu_custom_call.1} parent=1 // pred_check
      _
    $region27: #{tpu_custom_call.1} parent=1 // pred_check_branch
      %62 = sbr.rel (0) target = $region29
    $region28: #{tpu_custom_call.1} parent=1 // pred_region
      _
    $region29: #{tpu_custom_call.1} parent=1 // pred_fallthru
      _
    // Predicated region
    $region30: #{tpu_custom_call.1} parent=1 // pred_check
      _
    $region31: #{tpu_custom_call.1} parent=1 // pred_check_branch
      %64 = sbr.rel (0) target = $region33
    $region32: #{tpu_custom_call.1} parent=1 // pred_region
      %s66 = ssub.s32 256, 256
      %67 = vsyncadd [#allocation8], %s66
      %s68 = sshll.u32 [#allocation7], 4
      %s69 = int_to_ptr.vmem [resolvable:$true] %s68
      %74 = dma.hbm_to_vmem [thread:$0]  %s8, 256, %s69, [#allocation8], 64, 64, 4
    $region33: #{tpu_custom_call.1} parent=1 // pred_fallthru
      _
    // Predicated region
    $region34: #{tpu_custom_call.1} parent=1 // pred_check
      _
    $region35: #{tpu_custom_call.1} parent=1 // pred_check_branch
      %76 = sbr.rel (0) target = $region37
    $region36: #{tpu_custom_call.1} parent=1 // pred_region
      _
    $region37: #{tpu_custom_call.1} parent=1 // pred_fallthru
      _
    // Predicated region
    $region38: #{tpu_custom_call.1} parent=1 // pred_check
      _
    $region39: #{tpu_custom_call.1} parent=1 // pred_check_branch
      %78 = sbr.rel (0) target = $region41
    $region40: #{tpu_custom_call.1} parent=1 // pred_region
      %79 = dma.done [#allocation5], 512
    $region41: #{tpu_custom_call.1} parent=1 // pred_fallthru
      _
    // Predicated region
    $region42: #{tpu_custom_call.1} parent=1 // pred_check
      _
    $region43: #{tpu_custom_call.1} parent=1 // pred_check_branch
      %81 = sbr.rel (0) target = $region45
    $region44: #{tpu_custom_call.1} parent=1 // pred_region
      %82 = dma.done [#allocation8], 256
    $region45: #{tpu_custom_call.1} parent=1 // pred_fallthru
      _
    %s83 = sadd.s32 0, 0
    %s84 = smul.u32 8, %s83
    %p85 = scmp.lt.s32.totalorder %s84, 7
    %s86 = scalar_select %p85, %s84, 7
    %s87 = smul.addr %s86, 4
    %s88 = scalar_lea.vmem %s1, %s87
    %s89 = sadd.s32 0, 0
    %s90 = smul.u32 8, %s89
    %p91 = scmp.lt.s32.totalorder %s90, 7
    %s92 = scalar_select %p91, %s90, 7
    %s93 = smul.addr %s92, 4
    %s94 = scalar_lea.vmem %s2, %s93
    %s95 = sadd.s32 0, 0
    %s96 = smul.u32 8, %s95
    %p97 = scmp.lt.s32.totalorder %s96, 7
    %s98 = scalar_select %p97, %s96, 7
    %s99 = smul.addr %s98, 4
    %s100 = scalar_lea.vmem %s1, %s99
    %s101 = sadd.s32 0, 0
    %s102 = smul.u32 8, %s101
    %s103 = sadd.s32 0, 0
    %s104 = smul.u32 8, %s103
    %p105 = scmp.lt.s32.totalorder %s104, 7
    %s106 = scalar_select %p105, %s104, 7
    %s107 = smul.addr %s106, 4
    %s108 = scalar_lea.vmem %s2, %s107
    %s109 = sadd.s32 0, 0
    %s110 = smul.u32 8, %s109
    %s111 = sadd.s32 0, 0
    %s112 = smul.u32 8, %s111
    %p114 = scmp.eq.s32.totalorder 0, 0
    // Predicated region
    $region46: #{tpu_custom_call.1} parent=1 // pred_check
      %p115 = pneg %p114
    $region47: #{tpu_custom_call.1} parent=1 // pred_check_branch
      %117 = sbr.rel (%p115) target = $region49
    $region48: #{tpu_custom_call.1} parent=1 // pred_region
      %118 = vst [vmem:[#allocation9] sm:$0xff] 0.0
      %119 = vst [vmem:[#allocation9 + $0x8] sm:$0xff] 0.0
      %120 = vst [vmem:[#allocation9 + $0x10] sm:$0xff] 0.0
    $region49: #{tpu_custom_call.1} parent=1 // pred_fallthru
      _
    %v121 = vld [vmem:[%s100] sm:$0xf]
    %v122 = vld [vmem:[%s100 + $0x4] sm:$0xf]
    %v123 = vld [vmem:[%s100 + $0x8] sm:$0xf]
    %v124 = vld [vmem:[%s100 + $0xc] sm:$0xf]
    %v125 = vld [vmem:[%s100 + $0x10] sm:$0xf]
    %v126 = vld [vmem:[%s100 + $0x14] sm:$0xf]
    %v127 = vld [vmem:[%s100 + $0x18] sm:$0xf]
    %v128 = vld [vmem:[%s100 + $0x1c] sm:$0xf]
    %v129 = vld [vmem:[%s4] sm:$0xf]
    %v130 = vld [vmem:[%s4 + $0x4] sm:$0xf]
    %v131 = vld [vmem:[%s4 + $0x8] sm:$0xf]
    %v132 = vld [vmem:[%s4 + $0xc] sm:$0xf]
    %v133 = vld [vmem:[%s4 + $0x10] sm:$0xf]
    %v134 = vld [vmem:[%s4 + $0x14] sm:$0xf]
    %v135 = vld [vmem:[%s4 + $0x18] sm:$0xf]
    %v136 = vld [vmem:[%s4 + $0x1c] sm:$0xf]
    %v137 = vld [vmem:[%s4 + $0x20] sm:$0xf]
    %v138 = vld [vmem:[%s4 + $0x24] sm:$0xf]
    %v139 = vld [vmem:[%s4 + $0x28] sm:$0xf]
    %v140 = vld [vmem:[%s4 + $0x2c] sm:$0xf]
    %v141 = vld [vmem:[%s4 + $0x30] sm:$0xf]
    %v142 = vld [vmem:[%s4 + $0x34] sm:$0xf]
    %v143 = vld [vmem:[%s4 + $0x38] sm:$0xf]
    %v144 = vld [vmem:[%s4 + $0x3c] sm:$0xf]
    %v145 = vld [vmem:[%s5] sm:$0x1]
    %v147 = vlaneseq
    %v148 = vshrl.u32 %v147, 7
    %v149 = vsub.s32 0, %v148
    %v150 = vrot.slane %v145, %v149
    %v160 = vunpack.c.l.b16 %v121
    %v161 = vunpack.c.l.b16 %v122
    %v162 = vunpack.c.l.b16 %v123
    %v163 = vunpack.c.l.b16 %v124
    %v164 = vunpack.c.l.b16 %v125
    %v165 = vunpack.c.l.b16 %v126
    %v166 = vunpack.c.l.b16 %v127
    %v167 = vunpack.c.l.b16 %v128
    %v168 = vpack.c.b16 %v161, %v160
    %v169 = vpack.c.b16 %v163, %v162
    %v170 = vpack.c.b16 %v165, %v164
    %v171 = vpack.c.b16 %v167, %v166
    %v192 = vunpack.c.l.b16 %v129
    %v193 = vunpack.c.l.b16 %v130
    %v194 = vunpack.c.l.b16 %v131
    %v195 = vunpack.c.l.b16 %v132
    %v196 = vunpack.c.l.b16 %v133
    %v197 = vunpack.c.l.b16 %v134
    %v198 = vunpack.c.l.b16 %v135
    %v199 = vunpack.c.l.b16 %v136
    %v200 = vunpack.c.l.b16 %v137
    %v201 = vunpack.c.l.b16 %v138
    %v202 = vunpack.c.l.b16 %v139
    %v203 = vunpack.c.l.b16 %v140
    %v204 = vunpack.c.l.b16 %v141
    %v205 = vunpack.c.l.b16 %v142
    %v206 = vunpack.c.l.b16 %v143
    %v207 = vunpack.c.l.b16 %v144
    %v208 = vpack.c.b16 %v193, %v192
    %v209 = vpack.c.b16 %v195, %v194
    %v210 = vpack.c.b16 %v197, %v196
    %v211 = vpack.c.b16 %v199, %v198
    %v212 = vpack.c.b16 %v201, %v200
    %v213 = vpack.c.b16 %v203, %v202
    %v214 = vpack.c.b16 %v205, %v204
    %v215 = vpack.c.b16 %v207, %v206
    %224 = vmatprep.subr.bf16.mxu0 0
    %225 = vmatpush1.bf16.msra.mxu0 %v215
    %226 = vmatprep.subr.bf16.mxu0 0
    %227 = vmatpush1.bf16.msra.mxu0 %v214
    %228 = vmatprep.subr.bf16.mxu0 0
    %229 = vmatpush1.bf16.msra.mxu0 %v213
    %230 = vmatprep.subr.bf16.mxu0 0
    %231 = vmatpush1.bf16.msra.mxu0 %v212
    %232 = vmatprep.subr.bf16.mxu0 0
    %233 = vmatpush1.bf16.msra.mxu0 %v211
    %234 = vmatprep.subr.bf16.mxu0 0
    %235 = vmatpush1.bf16.msra.mxu0 %v210
    %236 = vmatprep.subr.bf16.mxu0 0
    %237 = vmatpush1.bf16.msra.mxu0 %v209
    %238 = vmatprep.subr.bf16.mxu0 0
    %239 = vmatpush1.bf16.msra.mxu0 %v208
    %240 = vmatprep.subr.bf16.mxu0 0
    %241 = vmatpush2.bf16.msra.mxu0 0
    %242 = vmatprep.subr.bf16.mxu0 0
    %243 = vmatpush2.bf16.msra.mxu0 0
    %244 = vmatprep.subr.bf16.mxu0 0
    %245 = vmatpush2.bf16.msra.mxu0 0
    %246 = vmatprep.subr.bf16.mxu0 0
    %247 = vmatpush2.bf16.msra.mxu0 0
    %248 = vmatprep.subr.bf16.mxu0 0
    %249 = vmatpush2.bf16.msra.mxu0 0
    %250 = vmatprep.subr.bf16.mxu0 0
    %251 = vmatpush2.bf16.msra.mxu0 0
    %252 = vmatprep.subr.bf16.mxu0 0
    %253 = vmatpush2.bf16.msra.mxu0 0
    %254 = vmatprep.subr.bf16.mxu0 0
    %255 = vmatpush2.bf16.msra.mxu0 0
    %256 = vmatprep.mubr.bf16.mxu0 0
    %257 = vmatmul.mubr.bf16.gmra.mxu0 %v168
    %v258 = vpop.f32.mrf.mxu0
    %v259 = vadd.f32 %v150, %v258
    %v260 = vpop.f32.mrf.mxu0
    %v261 = vpop.f32.mrf.mxu0
    %v262 = vadd.f32 %v150, %v261
    %v263 = vpop.f32.mrf.mxu0
    %264 = vmatprep.mubr.bf16.mxu0 0
    %265 = vmatmul.mubr.bf16.gmra.mxu0 %v169
    %v266 = vpop.f32.mrf.mxu0
    %v267 = vadd.f32 %v150, %v266
    %v268 = vpop.f32.mrf.mxu0
    %v269 = vpop.f32.mrf.mxu0
    %v270 = vadd.f32 %v150, %v269
    %v271 = vpop.f32.mrf.mxu0
    %272 = vmatprep.mubr.bf16.mxu0 0
    %273 = vmatmul.mubr.bf16.gmra.mxu0 %v170
    %v274 = vpop.f32.mrf.mxu0
    %v275 = vadd.f32 %v150, %v274
    %v276 = vpop.f32.mrf.mxu0
    %v277 = vpop.f32.mrf.mxu0
    %v278 = vadd.f32 %v150, %v277
    %v279 = vpop.f32.mrf.mxu0
    %280 = vmatprep.mubr.bf16.mxu0 0
    %281 = vmatmul.mubr.bf16.gmra.mxu0 %v171
    %v282 = vpop.f32.mrf.mxu0
    %v283 = vadd.f32 %v150, %v282
    %v284 = vpop.f32.mrf.mxu0
    %v285 = vpop.f32.mrf.mxu0
    %v286 = vadd.f32 %v150, %v285
    %v287 = vpop.f32.mrf.mxu0
    %288 = vdwg.mxu0
    %v289 = vmax.f32 %v259, 0.0
    %v290 = vmax.f32 %v262, 0.0
    %v291 = vmax.f32 %v267, 0.0
    %v292 = vmax.f32 %v270, 0.0
    %v293 = vmax.f32 %v275, 0.0
    %v294 = vmax.f32 %v278, 0.0
    %v295 = vmax.f32 %v283, 0.0
    %v296 = vmax.f32 %v286, 0.0
    %v297 = vpack.c.bf16 %v290, %v289
    %v298 = vpack.c.bf16 %v292, %v291
    %v299 = vpack.c.bf16 %v294, %v293
    %v300 = vpack.c.bf16 %v296, %v295
    %v301 = vld [vmem:[%s6] sm:$0xf]
    %v302 = vld [vmem:[%s6 + $0x4] sm:$0xf]
    %v303 = vld [vmem:[%s6 + $0x8] sm:$0xf]
    %v304 = vld [vmem:[%s6 + $0xc] sm:$0xf]
    %v305 = vld [vmem:[%s7] sm:$0x1]
    %v307 = vlaneseq
    %v308 = vshrl.u32 %v307, 7
    %v309 = vsub.s32 0, %v308
    %v310 = vrot.slane %v305, %v309
    %v316 = vunpack.c.l.b16 %v301
    %v317 = vunpack.c.l.b16 %v302
    %v318 = vunpack.c.l.b16 %v303
    %v319 = vunpack.c.l.b16 %v304
    %v320 = vpack.c.b16 %v317, %v316
    %v321 = vpack.c.b16 %v319, %v318
    %vm324 = vcmask 261120
    %v326 = vsel %vm324, %v297, 0
    %v329 = vsel %vm324, %v298, 0
    %v332 = vsel %vm324, %v299, 0
    %v335 = vsel %vm324, %v300, 0
    %337 = vmatprep.subr.bf16.mxu0 0
    %338 = vmatpush1.bf16.msra.mxu0 0
    %339 = vmatprep.subr.bf16.mxu0 0
    %340 = vmatpush1.bf16.msra.mxu0 0
    %341 = vmatprep.subr.bf16.mxu0 0
    %342 = vmatpush1.bf16.msra.mxu0 0
    %343 = vmatprep.subr.bf16.mxu0 0
    %344 = vmatpush1.bf16.msra.mxu0 0
    %345 = vmatprep.subr.bf16.mxu0 0
    %346 = vmatpush1.bf16.msra.mxu0 0
    %347 = vmatprep.subr.bf16.mxu0 0
    %348 = vmatpush1.bf16.msra.mxu0 0
    %349 = vmatprep.subr.bf16.mxu0 0
    %350 = vmatpush1.bf16.msra.mxu0 %v321
    %351 = vmatprep.subr.bf16.mxu0 0
    %352 = vmatpush1.bf16.msra.mxu0 %v320
    %353 = vmatprep.subr.bf16.mxu0 0
    %354 = vmatpush2.bf16.msra.mxu0 0
    %355 = vmatprep.subr.bf16.mxu0 0
    %356 = vmatpush2.bf16.msra.mxu0 0
    %357 = vmatprep.subr.bf16.mxu0 0
    %358 = vmatpush2.bf16.msra.mxu0 0
    %359 = vmatprep.subr.bf16.mxu0 0
    %360 = vmatpush2.bf16.msra.mxu0 0
    %361 = vmatprep.subr.bf16.mxu0 0
    %362 = vmatpush2.bf16.msra.mxu0 0
    %363 = vmatprep.subr.bf16.mxu0 0
    %364 = vmatpush2.bf16.msra.mxu0 0
    %365 = vmatprep.subr.bf16.mxu0 0
    %366 = vmatpush2.bf16.msra.mxu0 0
    %367 = vmatprep.subr.bf16.mxu0 0
    %368 = vmatpush2.bf16.msra.mxu0 0
    %369 = vmatprep.mubr.bf16.mxu0 0
    %370 = vmatmul.mubr.bf16.gmra.mxu0 %v326
    %v371 = vpop.f32.mrf.mxu0
    %v372 = vadd.f32 %v310, %v371
    %v373 = vpop.f32.mrf.mxu0
    %v374 = vpop.f32.mrf.mxu0
    %v375 = vadd.f32 %v310, %v374
    %v376 = vpop.f32.mrf.mxu0
    %377 = vmatprep.mubr.bf16.mxu0 0
    %378 = vmatmul.mubr.bf16.gmra.mxu0 %v329
    %v379 = vpop.f32.mrf.mxu0
    %v380 = vadd.f32 %v310, %v379
    %v381 = vpop.f32.mrf.mxu0
    %v382 = vpop.f32.mrf.mxu0
    %v383 = vadd.f32 %v310, %v382
    %v384 = vpop.f32.mrf.mxu0
    %385 = vmatprep.mubr.bf16.mxu0 0
    %386 = vmatmul.mubr.bf16.gmra.mxu0 %v332
    %v387 = vpop.f32.mrf.mxu0
    %v388 = vadd.f32 %v310, %v387
    %v389 = vpop.f32.mrf.mxu0
    %v390 = vpop.f32.mrf.mxu0
    %v391 = vadd.f32 %v310, %v390
    %v392 = vpop.f32.mrf.mxu0
    %393 = vmatprep.mubr.bf16.mxu0 0
    %394 = vmatmul.mubr.bf16.gmra.mxu0 %v335
    %v395 = vpop.f32.mrf.mxu0
    %v396 = vadd.f32 %v310, %v395
    %v397 = vpop.f32.mrf.mxu0
    %v398 = vpop.f32.mrf.mxu0
    %v399 = vadd.f32 %v310, %v398
    %v400 = vpop.f32.mrf.mxu0
    %401 = vdwg.mxu0
    %v402 = vmax.f32 %v372, 0.0
    %v403 = vmax.f32 %v375, 0.0
    %v404 = vmax.f32 %v380, 0.0
    %v405 = vmax.f32 %v383, 0.0
    %v406 = vmax.f32 %v388, 0.0
    %v407 = vmax.f32 %v391, 0.0
    %v408 = vmax.f32 %v396, 0.0
    %v409 = vmax.f32 %v399, 0.0
    %v410 = vpack.c.bf16 %v403, %v402
    %v411 = vpack.c.bf16 %v405, %v404
    %v412 = vpack.c.bf16 %v407, %v406
    %v413 = vpack.c.bf16 %v409, %v408
    %v414 = vld [vmem:[#allocation7] sm:$0xf]
    %v415 = vld [vmem:[#allocation7 + $0x4] sm:$0xf]
    %v416 = vld [vmem:[#allocation7 + $0x8] sm:$0xf]
    %v417 = vld [vmem:[#allocation7 + $0xc] sm:$0xf]
    %v418 = vld [vmem:[%s9] sm:$0x1]
    %v420 = vlaneseq
    %v421 = vshrl.u32 %v420, 7
    %v422 = vsub.s32 0, %v421
    %v423 = vrot.slane %v418, %v422
    %v429 = vunpack.c.l.b16 %v414
    %v430 = vunpack.c.l.b16 %v415
    %v431 = vunpack.c.l.b16 %v416
    %v432 = vunpack.c.l.b16 %v417
    %v433 = vpack.c.b16 %v430, %v429
    %v434 = vpack.c.b16 %v432, %v431
    %v438 = vsel %vm324, %v410, 0
    %v441 = vsel %vm324, %v411, 0
    %v444 = vsel %vm324, %v412, 0
    %v447 = vsel %vm324, %v413, 0
    %449 = vmatprep.subr.bf16.mxu0 0
    %450 = vmatpush1.bf16.msra.mxu0 0
    %451 = vmatprep.subr.bf16.mxu0 0
    %452 = vmatpush1.bf16.msra.mxu0 0
    %453 = vmatprep.subr.bf16.mxu0 0
    %454 = vmatpush1.bf16.msra.mxu0 0
    %455 = vmatprep.subr.bf16.mxu0 0
    %456 = vmatpush1.bf16.msra.mxu0 0
    %457 = vmatprep.subr.bf16.mxu0 0
    %458 = vmatpush1.bf16.msra.mxu0 0
    %459 = vmatprep.subr.bf16.mxu0 0
    %460 = vmatpush1.bf16.msra.mxu0 0
    %461 = vmatprep.subr.bf16.mxu0 0
    %462 = vmatpush1.bf16.msra.mxu0 %v434
    %463 = vmatprep.subr.bf16.mxu0 0
    %464 = vmatpush1.bf16.msra.mxu0 %v433
    %465 = vmatprep.subr.bf16.mxu0 0
    %466 = vmatpush2.bf16.msra.mxu0 0
    %467 = vmatprep.subr.bf16.mxu0 0
    %468 = vmatpush2.bf16.msra.mxu0 0
    %469 = vmatprep.subr.bf16.mxu0 0
    %470 = vmatpush2.bf16.msra.mxu0 0
    %471 = vmatprep.subr.bf16.mxu0 0
    %472 = vmatpush2.bf16.msra.mxu0 0
    %473 = vmatprep.subr.bf16.mxu0 0
    %474 = vmatpush2.bf16.msra.mxu0 0
    %475 = vmatprep.subr.bf16.mxu0 0
    %476 = vmatpush2.bf16.msra.mxu0 0
    %477 = vmatprep.subr.bf16.mxu0 0
    %478 = vmatpush2.bf16.msra.mxu0 0
    %479 = vmatprep.subr.bf16.mxu0 0
    %480 = vmatpush2.bf16.msra.mxu0 0
    %481 = vmatprep.mubr.bf16.mxu0 0
    %482 = vmatmul.mubr.bf16.gmra.mxu0 %v438
    %v483 = vpop.f32.mrf.mxu0
    %v484 = vadd.f32 %v423, %v483
    %v485 = vpop.f32.mrf.mxu0
    %v486 = vpop.f32.mrf.mxu0
    %v487 = vadd.f32 %v423, %v486
    %v488 = vpop.f32.mrf.mxu0
    %489 = vmatprep.mubr.bf16.mxu0 0
    %490 = vmatmul.mubr.bf16.gmra.mxu0 %v441
    %v491 = vpop.f32.mrf.mxu0
    %v492 = vadd.f32 %v423, %v491
    %v493 = vpop.f32.mrf.mxu0
    %v494 = vpop.f32.mrf.mxu0
    %v495 = vadd.f32 %v423, %v494
    %v496 = vpop.f32.mrf.mxu0
    %497 = vmatprep.mubr.bf16.mxu0 0
    %498 = vmatmul.mubr.bf16.gmra.mxu0 %v444
    %v499 = vpop.f32.mrf.mxu0
    %v500 = vadd.f32 %v423, %v499
    %v501 = vpop.f32.mrf.mxu0
    %v502 = vpop.f32.mrf.mxu0
    %v503 = vadd.f32 %v423, %v502
    %v504 = vpop.f32.mrf.mxu0
    %505 = vmatprep.mubr.bf16.mxu0 0
    %506 = vmatmul.mubr.bf16.gmra.mxu0 %v447
    %v507 = vpop.f32.mrf.mxu0
    %v508 = vadd.f32 %v423, %v507
    %v509 = vpop.f32.mrf.mxu0
    %v510 = vpop.f32.mrf.mxu0
    %v511 = vadd.f32 %v423, %v510
    %v512 = vpop.f32.mrf.mxu0
    %513 = vdwg.mxu0
    %v514 = vunpack.c.l.bf16 %v121
    %v515 = vunpack.c.l.bf16 %v122
    %v516 = vunpack.c.l.bf16 %v123
    %v517 = vunpack.c.l.bf16 %v124
    %v518 = vunpack.c.l.bf16 %v125
    %v519 = vunpack.c.l.bf16 %v126
    %v520 = vunpack.c.l.bf16 %v127
    %v521 = vunpack.c.l.bf16 %v128
    %v522 = vld [vmem:[%s108] sm:$0xf]
    %v523 = vld [vmem:[%s108 + $0x4] sm:$0xf]
    %v524 = vld [vmem:[%s108 + $0x8] sm:$0xf]
    %v525 = vld [vmem:[%s108 + $0xc] sm:$0xf]
    %v526 = vld [vmem:[%s108 + $0x10] sm:$0xf]
    %v527 = vld [vmem:[%s108 + $0x14] sm:$0xf]
    %v528 = vld [vmem:[%s108 + $0x18] sm:$0xf]
    %v529 = vld [vmem:[%s108 + $0x1c] sm:$0xf]
    %v530 = vunpack.c.l.bf16 %v522
    %v531 = vunpack.c.l.bf16 %v523
    %v532 = vunpack.c.l.bf16 %v524
    %v533 = vunpack.c.l.bf16 %v525
    %v534 = vunpack.c.l.bf16 %v526
    %v535 = vunpack.c.l.bf16 %v527
    %v536 = vunpack.c.l.bf16 %v528
    %v537 = vunpack.c.l.bf16 %v529
    %v538 = vld [vmem:[#allocation4] sm:$0xf]
    %v539 = vld [vmem:[#allocation4 + $0x4] sm:$0xf]
    %v540 = vld [vmem:[#allocation4 + $0x8] sm:$0xf]
    %v541 = vld [vmem:[#allocation4 + $0xc] sm:$0xf]
    %v542 = vld [vmem:[#allocation4 + $0x10] sm:$0xf]
    %v543 = vld [vmem:[#allocation4 + $0x14] sm:$0xf]
    %v544 = vld [vmem:[#allocation4 + $0x18] sm:$0xf]
    %v545 = vld [vmem:[#allocation4 + $0x1c] sm:$0xf]
    %v546 = vunpack.c.l.bf16 %v538
    %v547 = vunpack.c.l.bf16 %v539
    %v548 = vunpack.c.l.bf16 %v540
    %v549 = vunpack.c.l.bf16 %v541
    %v550 = vunpack.c.l.bf16 %v542
    %v551 = vunpack.c.l.bf16 %v543
    %v552 = vunpack.c.l.bf16 %v544
    %v553 = vunpack.c.l.bf16 %v545
    %v554 = vadd.f32 %v530, %v546
    %v555 = vadd.f32 %v531, %v547
    %v556 = vadd.f32 %v532, %v548
    %v557 = vadd.f32 %v533, %v549
    %v558 = vadd.f32 %v534, %v550
    %v559 = vadd.f32 %v535, %v551
    %v560 = vadd.f32 %v536, %v552
    %v561 = vadd.f32 %v537, %v553
    %v562 = vadd.f32 %v554, %v484
    %v563 = vadd.f32 %v555, %v487
    %v564 = vadd.f32 %v556, %v492
    %v565 = vadd.f32 %v557, %v495
    %v566 = vadd.f32 %v558, %v500
    %v567 = vadd.f32 %v559, %v503
    %v568 = vadd.f32 %v560, %v508
    %v569 = vadd.f32 %v561, %v511
    %v570 = vsub.f32 %v562, %v514
    %v571 = vsub.f32 %v563, %v515
    %v572 = vsub.f32 %v564, %v516
    %v573 = vsub.f32 %v565, %v517
    %v574 = vsub.f32 %v566, %v518
    %v575 = vsub.f32 %v567, %v519
    %v576 = vsub.f32 %v568, %v520
    %v577 = vsub.f32 %v569, %v521
    %v578 = vmul.f32 %v562, %v562
    %v579 = vmul.f32 %v563, %v563
    %v580 = vmul.f32 %v564, %v564
    %v581 = vmul.f32 %v565, %v565
    %v582 = vmul.f32 %v566, %v566
    %v583 = vmul.f32 %v567, %v567
    %v584 = vmul.f32 %v568, %v568
    %v585 = vmul.f32 %v569, %v569
    %586 = vadd.xlane.f32.xlu0 %v578
    %v587 = vpop.xlane.xlu0 %586
    %588 = vadd.xlane.f32.xlu0 %v579
    %v589 = vpop.xlane.xlu0 %588
    %590 = vadd.xlane.f32.xlu0 %v580
    %v591 = vpop.xlane.xlu0 %590
    %592 = vadd.xlane.f32.xlu0 %v581
    %v593 = vpop.xlane.xlu0 %592
    %594 = vadd.xlane.f32.xlu0 %v582
    %v595 = vpop.xlane.xlu0 %594
    %596 = vadd.xlane.f32.xlu0 %v583
    %v597 = vpop.xlane.xlu0 %596
    %598 = vadd.xlane.f32.xlu0 %v584
    %v599 = vpop.xlane.xlu0 %598
    %600 = vadd.xlane.f32.xlu0 %v585
    %v601 = vpop.xlane.xlu0 %600
    %v602 = vmul.f32 %v514, %v514
    %v603 = vmul.f32 %v515, %v515
    %v604 = vmul.f32 %v516, %v516
    %v605 = vmul.f32 %v517, %v517
    %v606 = vmul.f32 %v518, %v518
    %v607 = vmul.f32 %v519, %v519
    %v608 = vmul.f32 %v520, %v520
    %v609 = vmul.f32 %v521, %v521
    %610 = vadd.xlane.f32.xlu0 %v602
    %v611 = vpop.xlane.xlu0 %610
    %612 = vadd.xlane.f32.xlu0 %v603
    %v613 = vpop.xlane.xlu0 %612
    %614 = vadd.xlane.f32.xlu0 %v604
    %v615 = vpop.xlane.xlu0 %614
    %616 = vadd.xlane.f32.xlu0 %v605
    %v617 = vpop.xlane.xlu0 %616
    %618 = vadd.xlane.f32.xlu0 %v606
    %v619 = vpop.xlane.xlu0 %618
    %620 = vadd.xlane.f32.xlu0 %v607
    %v621 = vpop.xlane.xlu0 %620
    %622 = vadd.xlane.f32.xlu0 %v608
    %v623 = vpop.xlane.xlu0 %622
    %624 = vadd.xlane.f32.xlu0 %v609
    %v625 = vpop.xlane.xlu0 %624
    %v626 = vmax.f32 %v587, 1e-16
    %v627 = vmax.f32 %v589, 1e-16
    %v628 = vmax.f32 %v591, 1e-16
    %v629 = vmax.f32 %v593, 1e-16
    %v630 = vmax.f32 %v595, 1e-16
    %v631 = vmax.f32 %v597, 1e-16
    %v632 = vmax.f32 %v599, 1e-16
    %v633 = vmax.f32 %v601, 1e-16
    %v634 = vrsqrt.pop %v626
    %v635 = vrsqrt.pop %v627
    %v636 = vrsqrt.pop %v628
    %v637 = vrsqrt.pop %v629
    %v638 = vrsqrt.pop %v630
    %v639 = vrsqrt.pop %v631
    %v640 = vrsqrt.pop %v632
    %v641 = vrsqrt.pop %v633
    %v642 = vmax.f32 %v611, 1e-16
    %v643 = vmax.f32 %v613, 1e-16
    %v644 = vmax.f32 %v615, 1e-16
    %v645 = vmax.f32 %v617, 1e-16
    %v646 = vmax.f32 %v619, 1e-16
    %v647 = vmax.f32 %v621, 1e-16
    %v648 = vmax.f32 %v623, 1e-16
    %v649 = vmax.f32 %v625, 1e-16
    %v650 = vrsqrt.pop %v642
    %v651 = vrsqrt.pop %v643
    %v652 = vrsqrt.pop %v644
    %v653 = vrsqrt.pop %v645
    %v654 = vrsqrt.pop %v646
    %v655 = vrsqrt.pop %v647
    %v656 = vrsqrt.pop %v648
    %v657 = vrsqrt.pop %v649
    %v658 = vmul.f32 %v634, %v650
    %v659 = vmul.f32 %v635, %v651
    %v660 = vmul.f32 %v636, %v652
    %v661 = vmul.f32 %v637, %v653
    %v662 = vmul.f32 %v638, %v654
    %v663 = vmul.f32 %v639, %v655
    %v664 = vmul.f32 %v640, %v656
    %v665 = vmul.f32 %v641, %v657
    %v666 = vlaneseq
    %v667 = vand.u32 %v666, 127
    %v668 = vlaneseq
    %v669 = vshrl.u32 %v668, 7
    %vm670 = vcmp.lt.s32.totalorder %v667, 0
    %v671 = vsub.s32 0, %v667
    %v672 = vsel %vm670, %v671, %v667
    %v673 = vshrl.u32 %v672, 3
    %v674 = vand.u32 %v672, 7
    %v675 = vsub.s32 0, %v674
    %v676 = vsel %vm670, %v675, %v674
    %vm677 = vcmp.ne.s32.totalorder %v676, 0
    %vm678 = vcmp.lt.s32.totalorder %v676, 0
    %vm679 = vmand %vm678, %vm677
    %v680 = vadd.s32 %v676, 8
    %v681 = vsel %vm679, %v680, %v676
    %vm682 = vcmp.eq.s32.totalorder %v681, %v669
    %v683 = vsel %vm682, 1, 0
    %v684 = vcvt.s32.f32 %v683
    %v685 = vld [vmem:[#allocation9] sm:$0xff]
    %v686 = vmul.f32 %v570, %v570
    %v687 = vmul.f32 %v571, %v571
    %v688 = vmul.f32 %v572, %v572
    %v689 = vmul.f32 %v573, %v573
    %v690 = vmul.f32 %v574, %v574
    %v691 = vmul.f32 %v575, %v575
    %v692 = vmul.f32 %v576, %v576
    %v693 = vmul.f32 %v577, %v577
    %vm694 = vcmask 523264
    %v696 = vsel %vm694, %v684, 0
    %698 = vmatprep.subr.mxu0 0.0
    %699 = vmatpush1.msra.mxu0 0.0
    %700 = vmatprep.subr.mxu0 0.0
    %701 = vmatpush1.msra.mxu0 0.0
    %702 = vmatprep.subr.mxu0 0.0
    %703 = vmatpush1.msra.mxu0 0.0
    %704 = vmatprep.subr.mxu0 0.0
    %705 = vmatpush1.msra.mxu0 0.0
    %706 = vmatprep.subr.mxu0 0.0
    %707 = vmatpush1.msra.mxu0 0.0
    %708 = vmatprep.subr.mxu0 0.0
    %709 = vmatpush1.msra.mxu0 0.0
    %710 = vmatprep.subr.mxu0 0.0
    %711 = vmatpush1.msra.mxu0 0.0
    %712 = vmatprep.subr.mxu0 0.0
    %713 = vmatpush1.msra.mxu0 0.0
    %714 = vmatprep.subr.mxu0 0.0
    %715 = vmatpush1.msra.mxu0 %v693
    %716 = vmatprep.subr.mxu0 0.0
    %717 = vmatpush1.msra.mxu0 %v692
    %718 = vmatprep.subr.mxu0 0.0
    %719 = vmatpush1.msra.mxu0 %v691
    %720 = vmatprep.subr.mxu0 0.0
    %721 = vmatpush1.msra.mxu0 %v690
    %722 = vmatprep.subr.mxu0 0.0
    %723 = vmatpush1.msra.mxu0 %v689
    %724 = vmatprep.subr.mxu0 0.0
    %725 = vmatpush1.msra.mxu0 %v688
    %726 = vmatprep.subr.mxu0 0.0
    %727 = vmatpush1.msra.mxu0 %v687
    %728 = vmatprep.subr.mxu0 0.0
    %729 = vmatpush1.msra.mxu0 %v686
    %730 = vmatprep.subr.mxu0 0.0
    %731 = vmatpush2.msra.mxu0 0.0
    %732 = vmatprep.subr.mxu0 0.0
    %733 = vmatpush2.msra.mxu0 0.0
    %734 = vmatprep.subr.mxu0 0.0
    %735 = vmatpush2.msra.mxu0 0.0
    %736 = vmatprep.subr.mxu0 0.0
    %737 = vmatpush2.msra.mxu0 0.0
    %738 = vmatprep.subr.mxu0 0.0
    %739 = vmatpush2.msra.mxu0 0.0
    %740 = vmatprep.subr.mxu0 0.0
    %741 = vmatpush2.msra.mxu0 0.0
    %742 = vmatprep.subr.mxu0 0.0
    %743 = vmatpush2.msra.mxu0 0.0
    %744 = vmatprep.subr.mxu0 0.0
    %745 = vmatpush2.msra.mxu0 0.0
    %746 = vmatprep.subr.mxu0 0.0
    %747 = vmatpush2.msra.mxu0 0.0
    %748 = vmatprep.subr.mxu0 0.0
    %749 = vmatpush2.msra.mxu0 0.0
    %750 = vmatprep.subr.mxu0 0.0
    %751 = vmatpush2.msra.mxu0 0.0
    %752 = vmatprep.subr.mxu0 0.0
    %753 = vmatpush2.msra.mxu0 0.0
    %754 = vmatprep.subr.mxu0 0.0
    %755 = vmatpush2.msra.mxu0 0.0
    %756 = vmatprep.subr.mxu0 0.0
    %757 = vmatpush2.msra.mxu0 0.0
    %758 = vmatprep.subr.mxu0 0.0
    %759 = vmatpush2.msra.mxu0 0.0
    %760 = vmatprep.subr.mxu0 0.0
    %761 = vmatpush2.msra.mxu0 0.0
    %762 = vmatprep.mubr.f32.mxu0 0.0
    %763 = vmatmul.mubr.f32.gmra.mxu0 %v696
    %v764 = vpop.f32.mrf.mxu0
    %v765 = vadd.f32 0.0, %v764
    %v766 = vpop.f32.mrf.mxu0
    %767 = vdwg.mxu0
    %v768 = vadd.f32 %v685, %v765
    %769 = vst [vmem:[#allocation9] sm:$0xff] %v768
    %v770 = vld [vmem:[#allocation9 + $0x8] sm:$0xff]
    %v771 = vand.u32 2147483647, %v484
    %v772 = vand.u32 2147483647, %v487
    %v773 = vand.u32 2147483647, %v492
    %v774 = vand.u32 2147483647, %v495
    %v775 = vand.u32 2147483647, %v500
    %v776 = vand.u32 2147483647, %v503
    %v777 = vand.u32 2147483647, %v508
    %v778 = vand.u32 2147483647, %v511
    %779 = vmatprep.subr.mxu0 0.0
    %780 = vmatpush1.msra.mxu0 0.0
    %781 = vmatprep.subr.mxu0 0.0
    %782 = vmatpush1.msra.mxu0 0.0
    %783 = vmatprep.subr.mxu0 0.0
    %784 = vmatpush1.msra.mxu0 0.0
    %785 = vmatprep.subr.mxu0 0.0
    %786 = vmatpush1.msra.mxu0 0.0
    %787 = vmatprep.subr.mxu0 0.0
    %788 = vmatpush1.msra.mxu0 0.0
    %789 = vmatprep.subr.mxu0 0.0
    %790 = vmatpush1.msra.mxu0 0.0
    %791 = vmatprep.subr.mxu0 0.0
    %792 = vmatpush1.msra.mxu0 0.0
    %793 = vmatprep.subr.mxu0 0.0
    %794 = vmatpush1.msra.mxu0 0.0
    %795 = vmatprep.subr.mxu0 0.0
    %796 = vmatpush1.msra.mxu0 %v778
    %797 = vmatprep.subr.mxu0 0.0
    %798 = vmatpush1.msra.mxu0 %v777
    %799 = vmatprep.subr.mxu0 0.0
    %800 = vmatpush1.msra.mxu0 %v776
    %801 = vmatprep.subr.mxu0 0.0
    %802 = vmatpush1.msra.mxu0 %v775
    %803 = vmatprep.subr.mxu0 0.0
    %804 = vmatpush1.msra.mxu0 %v774
    %805 = vmatprep.subr.mxu0 0.0
    %806 = vmatpush1.msra.mxu0 %v773
    %807 = vmatprep.subr.mxu0 0.0
    %808 = vmatpush1.msra.mxu0 %v772
    %809 = vmatprep.subr.mxu0 0.0
    %810 = vmatpush1.msra.mxu0 %v771
    %811 = vmatprep.subr.mxu0 0.0
    %812 = vmatpush2.msra.mxu0 0.0
    %813 = vmatprep.subr.mxu0 0.0
    %814 = vmatpush2.msra.mxu0 0.0
    %815 = vmatprep.subr.mxu0 0.0
    %816 = vmatpush2.msra.mxu0 0.0
    %817 = vmatprep.subr.mxu0 0.0
    %818 = vmatpush2.msra.mxu0 0.0
    %819 = vmatprep.subr.mxu0 0.0
    %820 = vmatpush2.msra.mxu0 0.0
    %821 = vmatprep.subr.mxu0 0.0
    %822 = vmatpush2.msra.mxu0 0.0
    %823 = vmatprep.subr.mxu0 0.0
    %824 = vmatpush2.msra.mxu0 0.0
    %825 = vmatprep.subr.mxu0 0.0
    %826 = vmatpush2.msra.mxu0 0.0
    %827 = vmatprep.subr.mxu0 0.0
    %828 = vmatpush2.msra.mxu0 0.0
    %829 = vmatprep.subr.mxu0 0.0
    %830 = vmatpush2.msra.mxu0 0.0
    %831 = vmatprep.subr.mxu0 0.0
    %832 = vmatpush2.msra.mxu0 0.0
    %833 = vmatprep.subr.mxu0 0.0
    %834 = vmatpush2.msra.mxu0 0.0
    %835 = vmatprep.subr.mxu0 0.0
    %836 = vmatpush2.msra.mxu0 0.0
    %837 = vmatprep.subr.mxu0 0.0
    %838 = vmatpush2.msra.mxu0 0.0
    %839 = vmatprep.subr.mxu0 0.0
    %840 = vmatpush2.msra.mxu0 0.0
    %841 = vmatprep.subr.mxu0 0.0
    %842 = vmatpush2.msra.mxu0 0.0
    %843 = vmatprep.mubr.f32.mxu0 0.0
    %844 = vmatmul.mubr.f32.gmra.mxu0 %v696
    %v845 = vpop.f32.mrf.mxu0
    %v846 = vadd.f32 0.0, %v845
    %v847 = vpop.f32.mrf.mxu0
    %848 = vdwg.mxu0
    %v849 = vadd.f32 %v770, %v846
    %850 = vst [vmem:[#allocation9 + $0x8] sm:$0xff] %v849
    %v851 = vld [vmem:[#allocation9 + $0x10] sm:$0xff]
    %v852 = vmul.f32 %v562, %v514
    %v853 = vmul.f32 %v563, %v515
    %v854 = vmul.f32 %v564, %v516
    %v855 = vmul.f32 %v565, %v517
    %v856 = vmul.f32 %v566, %v518
    %v857 = vmul.f32 %v567, %v519
    %v858 = vmul.f32 %v568, %v520
    %v859 = vmul.f32 %v569, %v521
    %v860 = vmul.f32 %v852, %v658
    %v861 = vmul.f32 %v853, %v659
    %v862 = vmul.f32 %v854, %v660
    %v863 = vmul.f32 %v855, %v661
    %v864 = vmul.f32 %v856, %v662
    %v865 = vmul.f32 %v857, %v663
    %v866 = vmul.f32 %v858, %v664
    %v867 = vmul.f32 %v859, %v665
    %868 = vmatprep.subr.mxu0 0.0
    %869 = vmatpush1.msra.mxu0 0.0
    %870 = vmatprep.subr.mxu0 0.0
    %871 = vmatpush1.msra.mxu0 0.0
    %872 = vmatprep.subr.mxu0 0.0
    %873 = vmatpush1.msra.mxu0 0.0
    %874 = vmatprep.subr.mxu0 0.0
    %875 = vmatpush1.msra.mxu0 0.0
    %876 = vmatprep.subr.mxu0 0.0
    %877 = vmatpush1.msra.mxu0 0.0
    %878 = vmatprep.subr.mxu0 0.0
    %879 = vmatpush1.msra.mxu0 0.0
    %880 = vmatprep.subr.mxu0 0.0
    %881 = vmatpush1.msra.mxu0 0.0
    %882 = vmatprep.subr.mxu0 0.0
    %883 = vmatpush1.msra.mxu0 0.0
    %884 = vmatprep.subr.mxu0 0.0
    %885 = vmatpush1.msra.mxu0 %v867
    %886 = vmatprep.subr.mxu0 0.0
    %887 = vmatpush1.msra.mxu0 %v866
    %888 = vmatprep.subr.mxu0 0.0
    %889 = vmatpush1.msra.mxu0 %v865
    %890 = vmatprep.subr.mxu0 0.0
    %891 = vmatpush1.msra.mxu0 %v864
    %892 = vmatprep.subr.mxu0 0.0
    %893 = vmatpush1.msra.mxu0 %v863
    %894 = vmatprep.subr.mxu0 0.0
    %895 = vmatpush1.msra.mxu0 %v862
    %896 = vmatprep.subr.mxu0 0.0
    %897 = vmatpush1.msra.mxu0 %v861
    %898 = vmatprep.subr.mxu0 0.0
    %899 = vmatpush1.msra.mxu0 %v860
    %900 = vmatprep.subr.mxu0 0.0
    %901 = vmatpush2.msra.mxu0 0.0
    %902 = vmatprep.subr.mxu0 0.0
    %903 = vmatpush2.msra.mxu0 0.0
    %904 = vmatprep.subr.mxu0 0.0
    %905 = vmatpush2.msra.mxu0 0.0
    %906 = vmatprep.subr.mxu0 0.0
    %907 = vmatpush2.msra.mxu0 0.0
    %908 = vmatprep.subr.mxu0 0.0
    %909 = vmatpush2.msra.mxu0 0.0
    %910 = vmatprep.subr.mxu0 0.0
    %911 = vmatpush2.msra.mxu0 0.0
    %912 = vmatprep.subr.mxu0 0.0
    %913 = vmatpush2.msra.mxu0 0.0
    %914 = vmatprep.subr.mxu0 0.0
    %915 = vmatpush2.msra.mxu0 0.0
    %916 = vmatprep.subr.mxu0 0.0
    %917 = vmatpush2.msra.mxu0 0.0
    %918 = vmatprep.subr.mxu0 0.0
    %919 = vmatpush2.msra.mxu0 0.0
    %920 = vmatprep.subr.mxu0 0.0
    %921 = vmatpush2.msra.mxu0 0.0
    %922 = vmatprep.subr.mxu0 0.0
    %923 = vmatpush2.msra.mxu0 0.0
    %924 = vmatprep.subr.mxu0 0.0
    %925 = vmatpush2.msra.mxu0 0.0
    %926 = vmatprep.subr.mxu0 0.0
    %927 = vmatpush2.msra.mxu0 0.0
    %928 = vmatprep.subr.mxu0 0.0
    %929 = vmatpush2.msra.mxu0 0.0
    %930 = vmatprep.subr.mxu0 0.0
    %931 = vmatpush2.msra.mxu0 0.0
    %932 = vmatprep.mubr.f32.mxu0 0.0
    %933 = vmatmul.mubr.f32.gmra.mxu0 %v696
    %v934 = vpop.f32.mrf.mxu0
    %v935 = vadd.f32 0.0, %v934
    %v936 = vpop.f32.mrf.mxu0
    %937 = vdwg.mxu0
    %v938 = vadd.f32 %v851, %v935
    %939 = vst [vmem:[#allocation9 + $0x10] sm:$0xff] %v938
    // Predicated region
    $region50: #{tpu_custom_call.1} parent=1 // pred_check
      _
    $region51: #{tpu_custom_call.1} parent=1 // pred_check_branch
      %941 = sbr.rel (0) target = $region53
    $region52: #{tpu_custom_call.1} parent=1 // pred_region
      %s943 = ssub.s32 384, 384
      %944 = vsyncadd [#allocation6], %s943
      %s945 = sshll.u32 [#allocation9], 4
      %s946 = int_to_ptr.vmem [resolvable:$true] %s945
      %951 = dma.vmem_to_hbm [thread:$0]  %s946, 384, %s10, [#allocation6], 128, 128, 8
    $region53: #{tpu_custom_call.1} parent=1 // pred_fallthru
      _
    // Predicated region
    $region54: #{tpu_custom_call.1} parent=1 // pred_check
      _
    $region55: #{tpu_custom_call.1} parent=1 // pred_check_branch
      %953 = sbr.rel (0) target = $region57
    $region56: #{tpu_custom_call.1} parent=1 // pred_region
      %954 = dma.done [#allocation6], 384
    $region57: #{tpu_custom_call.1} parent=1 // pred_fallthru
      _
    %955 = vsyncpa [#allocation5], 1
    %956 = vsyncpa [#allocation8], 1
    %957 = vsyncpa [#allocation6], 1

</llo_original>
